<compile_context>
chip_gen: v5e
topology: v5e:2x2
jax: 0.10.0
libtpu: 0.0.40
codegen_flags: <defaults>
</compile_context>

<pallas_src>
import functools

import jax
import jax.numpy as jnp
from jax.experimental import pallas as pl
from jax.experimental.pallas import tpu as pltpu


def _ls_ce_kernel(x_ref, t_ref, out_ref, m_sc, l_sc, sx_sc, xl_sc,
                  *, epsilon, num_classes, batch_size, tb, tc, has_class_rem):
    bi = pl.program_id(0)              # batch-tile index (parallel)
    ci = pl.program_id(1)              # class-tile index (arbitrary, innermost)
    n_c = pl.num_programs(1)

    neg_big = jnp.float32(-1e30)

    # ---- init running stats at the first class tile -------------------------
    @pl.when(ci == 0)
    def _():
        m_sc[...] = jnp.full((tb, 1), neg_big, dtype=jnp.float32)
        l_sc[...] = jnp.zeros((tb, 1), dtype=jnp.float32)
        sx_sc[...] = jnp.zeros((tb, 1), dtype=jnp.float32)
        xl_sc[...] = jnp.zeros((tb, 1), dtype=jnp.float32)

    x_raw = x_ref[...].astype(jnp.float32)                 # (TB, TC)

    # Tile-relative column iota + tile-relative label (no absolute col ids).
    lane = jax.lax.broadcasted_iota(jnp.int32, (tb, tc), 1)
    rel_labels = t_ref[...] - ci * tc                      # (TB, 1) int32

    def update(x_exp, x_sum):
        # x_exp: logits with padded cols at -1e30 (or raw on the fast path)
        # x_sum: logits with padded cols at 0.0   (or raw on the fast path)
        m_prev = m_sc[...]
        m_new = jnp.maximum(m_prev, jnp.max(x_exp, axis=1, keepdims=True))
        alpha = jnp.exp(m_prev - m_new)
        # No select needed: exp(-1e30 - finite) == 0 exactly for padded cols.
        p = jnp.exp(x_exp - m_new)
        l_sc[...] = alpha * l_sc[...] + jnp.sum(p, axis=1, keepdims=True)
        m_sc[...] = m_new
        # running sum of logits (for the uniform-smoothing term)
        sx_sc[...] = sx_sc[...] + jnp.sum(x_sum, axis=1, keepdims=True)
        # pick x[label]: tile-relative compare; padded cols can never match a
        # valid row's label, and padded rows are masked at finalize.
        xl_sc[...] = xl_sc[...] + jnp.sum(
            jnp.where(lane == rel_labels, x_sum, 0.0), axis=1, keepdims=True)

    if not has_class_rem:
        # All class tiles are fully valid -> no column masking anywhere.
        update(x_raw, x_raw)
    else:
        is_rem = ci == n_c - 1

        @pl.when(jnp.logical_not(is_rem))
        def _():
            update(x_raw, x_raw)

        @pl.when(is_rem)
        def _():
            col_valid = (ci * tc + lane) < num_classes     # (TB, TC)
            x_m = jnp.where(col_valid, x_raw, neg_big)
            x_z = jnp.where(col_valid, x_raw, 0.0)
            update(x_m, x_z)

    # ---- finalize: fused label-smoothed loss, lane-dense partial output -----
    @pl.when(ci == n_c - 1)
    def _():
        row_ids = bi * tb + jax.lax.broadcasted_iota(jnp.int32, (tb, 1), 0)
        row_valid = row_ids < batch_size                   # (TB, 1)
        lse = m_sc[...] + jnp.log(l_sc[...])               # (TB, 1)
        cnum = jnp.float32(num_classes)
        row_loss = ((1.0 - epsilon) * (lse - xl_sc[...])
                    + (epsilon / cnum) * (cnum * lse - sx_sc[...]))
        partial = jnp.sum(jnp.where(row_valid, row_loss, 0.0))

        sub = jax.lax.broadcasted_iota(jnp.int32, (8, 128), 0)
        lane128 = jax.lax.broadcasted_iota(jnp.int32, (8, 128), 1)
        out_ref[...] = jnp.where((sub == 0) & (lane128 == 0), partial, 0.0)


def _choose_tiles(B, C, itemsize):
    # Class tile: full row when small, else a 128-aligned slab (online LSE
    # handles the split; the remainder class tile is masked in-kernel).
    TC = C if C <= 8192 else 2048
    # Dtype-aware per-block DMA budget (~4 MiB of input bytes, double-buffered
    # by the pipeline), so bf16 logits get larger batch tiles for free.
    max_rows = max(8, (4 * 1024 * 1024) // (TC * itemsize))
    # Cap the f32 in-kernel intermediate footprint (a few tile-sized f32
    # temporaries) so the whole block set stays inside the 32 MiB scoped VMEM
    # budget that is safe on v5e/v6e/v7x.
    max_rows = min(max_rows, max(8, (6 * 1024 * 1024) // (TC * 4)))
    max_rows = min(1024, max_rows)
    # Guarantee >= 2 batch tiles when B > 8 so the "parallel" batch axis can
    # be sharded across both v7x TensorCores (no effect on single-TC v5e/v6e).
    if B > 8:
        half = max(8, (pl.cdiv(B, 2) // 8) * 8)
        max_rows = min(max_rows, half)
    max_rows = max(8, (max_rows // 8) * 8)
    TB = B if B <= max_rows else max_rows
    return TB, TC


def cross_entropy_label_smooth(inputs, targets, num_classes, epsilon=0.1):
    """inputs: (B, C) float logits (f32 or bf16); targets: (B,) int labels -> scalar loss."""
    B, C = inputs.shape
    assert C == num_classes
    targets_2d = targets.astype(jnp.int32).reshape(B, 1)

    itemsize = jnp.dtype(inputs.dtype).itemsize
    TB, TC = _choose_tiles(B, C, itemsize)
    n_b = pl.cdiv(B, TB)
    n_c = pl.cdiv(C, TC)
    has_class_rem = (C % TC) != 0

    kernel = functools.partial(
        _ls_ce_kernel,
        epsilon=float(epsilon),
        num_classes=int(num_classes),
        batch_size=int(B),
        tb=TB,
        tc=TC,
        has_class_rem=has_class_rem,
    )

    cost = pl.CostEstimate(
        flops=5 * B * C,
        transcendentals=B * C + 2 * B,
        bytes_accessed=B * C * itemsize + B * 4 + n_b * 8 * 128 * 4,
    )

    # TODO(synk): a further restructure (emit per-row lse/sum-of-logits and do
    # the x[label] gather in the wrapper) could trim ~3 more VALU ops/element.
    partials = pl.pallas_call(
        kernel,
        out_shape=jax.ShapeDtypeStruct((n_b * 8, 128), jnp.float32),
        grid=(n_b, n_c),
        in_specs=[
            pl.BlockSpec((TB, TC), lambda i, c: (i, c)),   # logits tile
            pl.BlockSpec((TB, 1), lambda i, c: (i, 0)),    # labels (VMEM, resident)
        ],
        out_specs=pl.BlockSpec((8, 128), lambda i, c: (i, 0)),
        scratch_shapes=[pltpu.VMEM((TB, 1), jnp.float32)] * 4,
        compiler_params=pltpu.CompilerParams(
            dimension_semantics=("parallel", "arbitrary"),
            # Explicit limit is load-bearing on v5e (16 MiB scoped default)
            # and stays within the v7x guidance (64 MiB physical per TC).
            vmem_limit_bytes=32 * 1024 * 1024,
        ),
        cost_estimate=cost,
    )(inputs, targets_2d)

    # finalize: sum per-tile partials, divide by global batch exactly once.
    return jnp.sum(partials) / B


def _reference(inputs, targets, num_classes, epsilon=0.1):
    log_probs = jax.nn.log_softmax(inputs.astype(jnp.float32), axis=1)
    onehot = jax.nn.one_hot(targets, num_classes, dtype=jnp.float32)
    smoothed = (1.0 - epsilon) * onehot + epsilon / num_classes
    return (-smoothed * log_probs).mean(0).sum()


if __name__ == "__main__":
    key = jax.random.PRNGKey(0)
    B, num_classes = 8, 16
    k_logits, k_labels = jax.random.split(key)
    inputs = jax.random.normal(k_logits, (B, num_classes), dtype=jnp.float32)
    targets = jax.random.randint(k_labels, (B,), 0, num_classes, dtype=jnp.int32)

    # f32 path vs reference
    loss = cross_entropy_label_smooth(inputs, targets, num_classes, epsilon=0.1)
    loss = jax.block_until_ready(loss)
    ref = _reference(inputs, targets, num_classes, epsilon=0.1)
    assert jnp.allclose(loss, ref, atol=1e-5, rtol=1e-5), (loss, ref)

    # bf16 logits accepted straight from HBM (kernel upcasts internally)
    inputs_bf16 = inputs.astype(jnp.bfloat16)
    loss_bf16 = cross_entropy_label_smooth(inputs_bf16, targets, num_classes, epsilon=0.1)
    loss_bf16 = jax.block_until_ready(loss_bf16)
    ref_bf16 = _reference(inputs_bf16.astype(jnp.float32), targets, num_classes, epsilon=0.1)
    assert jnp.allclose(loss_bf16, ref_bf16, atol=1e-4, rtol=1e-4), (loss_bf16, ref_bf16)

    # TODO(synk): PyTorch ignore-index / out-of-range labels are not handled
    # (the original module does not handle them either).
    print("KERNEL_OK")
</pallas_src>

<mosaic_0001>
module attributes {stable_mosaic.version = 11 : i64} {
  func.func @_ls_ce_kernel(%arg0: i32, %arg1: i32, %arg2: memref<8x16xf32, #tpu.memory_space<vmem>>, %arg3: memref<8x1xi32, #tpu.memory_space<vmem>>, %arg4: memref<8x128xf32, #tpu.memory_space<vmem>>, %arg5: memref<8x1xf32, #tpu.memory_space<vmem>>, %arg6: memref<8x1xf32, #tpu.memory_space<vmem>>, %arg7: memref<8x1xf32, #tpu.memory_space<vmem>>, %arg8: memref<8x1xf32, #tpu.memory_space<vmem>>) attributes {dimension_semantics = [#tpu.dimension_semantics<parallel>, #tpu.dimension_semantics<arbitrary>], iteration_bounds = array<i64: 1, 1>, scalar_prefetch = 0 : i64, scratch_operands = 4 : i64, tpu.core_type = #tpu.core_type<tc>, window_params = [{transform_indices = @transform_0, window_bounds = array<i64: 8, 16>}, {transform_indices = @transform_1, window_bounds = array<i64: 8, 1>}, {transform_indices = @transform_2, window_bounds = array<i64: 8, 128>}]} {
    %c0_i32 = arith.constant 0 : i32
    %0 = arith.cmpi eq, %arg1, %c0_i32 : i32
    %1 = arith.extui %0 : i1 to i32
    %cst = arith.constant -1.000000e+30 : f32
    %c0_i32_0 = arith.constant 0 : i32
    %2 = arith.cmpi ne, %1, %c0_i32_0 : i32
    scf.if %2 {
      %42 = vector.broadcast %cst : f32 to vector<8x1xf32>
      %c0_27 = arith.constant 0 : index
      %c0_28 = arith.constant 0 : index
      %43 = vector.load %arg5[%c0_27, %c0_28] : memref<8x1xf32, #tpu.memory_space<vmem>>, vector<8x1xf32>
      tpu.vector_store %arg5[%c0_27, %c0_28], %42 {strides = array<i32>} : memref<8x1xf32, #tpu.memory_space<vmem>>, vector<8x1xf32>,
      %cst_29 = arith.constant 0.000000e+00 : f32
      %44 = vector.broadcast %cst_29 : f32 to vector<8x1xf32>
      %c0_30 = arith.constant 0 : index
      %c0_31 = arith.constant 0 : index
      %45 = vector.load %arg6[%c0_30, %c0_31] : memref<8x1xf32, #tpu.memory_space<vmem>>, vector<8x1xf32>
      tpu.vector_store %arg6[%c0_30, %c0_31], %44 {strides = array<i32>} : memref<8x1xf32, #tpu.memory_space<vmem>>, vector<8x1xf32>,
      %cst_32 = arith.constant 0.000000e+00 : f32
      %46 = vector.broadcast %cst_32 : f32 to vector<8x1xf32>
      %c0_33 = arith.constant 0 : index
      %c0_34 = arith.constant 0 : index
      %47 = vector.load %arg7[%c0_33, %c0_34] : memref<8x1xf32, #tpu.memory_space<vmem>>, vector<8x1xf32>
      tpu.vector_store %arg7[%c0_33, %c0_34], %46 {strides = array<i32>} : memref<8x1xf32, #tpu.memory_space<vmem>>, vector<8x1xf32>,
      %cst_35 = arith.constant 0.000000e+00 : f32
      %48 = vector.broadcast %cst_35 : f32 to vector<8x1xf32>
      %c0_36 = arith.constant 0 : index
      %c0_37 = arith.constant 0 : index
      %49 = vector.load %arg8[%c0_36, %c0_37] : memref<8x1xf32, #tpu.memory_space<vmem>>, vector<8x1xf32>
      tpu.vector_store %arg8[%c0_36, %c0_37], %48 {strides = array<i32>} : memref<8x1xf32, #tpu.memory_space<vmem>>, vector<8x1xf32>,
    } else {
    }
    %c0 = arith.constant 0 : index
    %c0_1 = arith.constant 0 : index
    %3 = vector.load %arg2[%c0, %c0_1] : memref<8x16xf32, #tpu.memory_space<vmem>>, vector<8x16xf32>
    %4 = tpu.iota {dimensions = array<i32: 1>} : vector<8x16xi32>
    %c0_2 = arith.constant 0 : index
    %c0_3 = arith.constant 0 : index
    %5 = vector.load %arg3[%c0_2, %c0_3] : memref<8x1xi32, #tpu.memory_space<vmem>>, vector<8x1xi32>
    %c16_i32 = arith.constant 16 : i32
    %6 = arith.muli %arg1, %c16_i32 : i32
    %7 = vector.broadcast %6 : i32 to vector<8x1xi32>
    %8 = arith.subi %5, %7 : vector<8x1xi32>
    %c0_4 = arith.constant 0 : index
    %c0_5 = arith.constant 0 : index
    %9 = vector.load %arg5[%c0_4, %c0_5] : memref<8x1xf32, #tpu.memory_space<vmem>>, vector<8x1xf32>
    %cst_6 = arith.constant dense<0xFF800000> : vector<8xf32>
    %10 = vector.multi_reduction <maximumf>, %3, %cst_6 [1] : vector<8x16xf32> to vector<8xf32>
    %11 = vector.shape_cast %10 : vector<8xf32> to vector<8x1xf32>
    %12 = arith.maximumf %9, %11 : vector<8x1xf32>
    %13 = arith.subf %9, %12 : vector<8x1xf32>
    %14 = math.exp %13 : vector<8x1xf32>
    %15 = vector.broadcast %12 : vector<8x1xf32> to vector<8x16xf32>
    %16 = arith.subf %3, %15 : vector<8x16xf32>
    %17 = math.exp %16 : vector<8x16xf32>
    %c0_7 = arith.constant 0 : index
    %c0_8 = arith.constant 0 : index
    %18 = vector.load %arg6[%c0_7, %c0_8] : memref<8x1xf32, #tpu.memory_space<vmem>>, vector<8x1xf32>
    %19 = arith.mulf %14, %18 : vector<8x1xf32>
    %cst_9 = arith.constant dense<0.000000e+00> : vector<8xf32>
    %20 = vector.multi_reduction <add>, %17, %cst_9 [1] : vector<8x16xf32> to vector<8xf32>
    %21 = vector.shape_cast %20 : vector<8xf32> to vector<8x1xf32>
    %22 = arith.addf %19, %21 : vector<8x1xf32>
    %c0_10 = arith.constant 0 : index
    %c0_11 = arith.constant 0 : index
    %23 = vector.load %arg6[%c0_10, %c0_11] : memref<8x1xf32, #tpu.memory_space<vmem>>, vector<8x1xf32>
    tpu.vector_store %arg6[%c0_10, %c0_11], %22 {strides = array<i32>} : memref<8x1xf32, #tpu.memory_space<vmem>>, vector<8x1xf32>,
    %c0_12 = arith.constant 0 : index
    %c0_13 = arith.constant 0 : index
    %24 = vector.load %arg5[%c0_12, %c0_13] : memref<8x1xf32, #tpu.memory_space<vmem>>, vector<8x1xf32>
    tpu.vector_store %arg5[%c0_12, %c0_13], %12 {strides = array<i32>} : memref<8x1xf32, #tpu.memory_space<vmem>>, vector<8x1xf32>,
    %c0_14 = arith.constant 0 : index
    %c0_15 = arith.constant 0 : index
    %25 = vector.load %arg7[%c0_14, %c0_15] : memref<8x1xf32, #tpu.memory_space<vmem>>, vector<8x1xf32>
    %cst_16 = arith.constant dense<0.000000e+00> : vector<8xf32>
    %26 = vector.multi_reduction <add>, %3, %cst_16 [1] : vector<8x16xf32> to vector<8xf32>
    %27 = vector.shape_cast %26 : vector<8xf32> to vector<8x1xf32>
    %28 = arith.addf %25, %27 : vector<8x1xf32>
    %c0_17 = arith.constant 0 : index
    %c0_18 = arith.constant 0 : index
    %29 = vector.load %arg7[%c0_17, %c0_18] : memref<8x1xf32, #tpu.memory_space<vmem>>, vector<8x1xf32>
    tpu.vector_store %arg7[%c0_17, %c0_18], %28 {strides = array<i32>} : memref<8x1xf32, #tpu.memory_space<vmem>>, vector<8x1xf32>,
    %c0_19 = arith.constant 0 : index
    %c0_20 = arith.constant 0 : index
    %30 = vector.load %arg8[%c0_19, %c0_20] : memref<8x1xf32, #tpu.memory_space<vmem>>, vector<8x1xf32>
    %31 = vector.broadcast %8 : vector<8x1xi32> to vector<8x16xi32>
    %32 = arith.cmpi eq, %4, %31 : vector<8x16xi32>
    %cst_21 = arith.constant 0.000000e+00 : f32
    %33 = vector.broadcast %cst_21 : f32 to vector<8x16xf32>
    %34 = arith.select %32, %3, %33 : vector<8x16xi1>, vector<8x16xf32>
    %cst_22 = arith.constant dense<0.000000e+00> : vector<8xf32>
    %35 = vector.multi_reduction <add>, %34, %cst_22 [1] : vector<8x16xf32> to vector<8xf32>
    %36 = vector.shape_cast %35 : vector<8xf32> to vector<8x1xf32>
    %37 = arith.addf %30, %36 : vector<8x1xf32>
    %c0_23 = arith.constant 0 : index
    %c0_24 = arith.constant 0 : index
    %38 = vector.load %arg8[%c0_23, %c0_24] : memref<8x1xf32, #tpu.memory_space<vmem>>, vector<8x1xf32>
    tpu.vector_store %arg8[%c0_23, %c0_24], %37 {strides = array<i32>} : memref<8x1xf32, #tpu.memory_space<vmem>>, vector<8x1xf32>,
    %c0_i32_25 = arith.constant 0 : i32
    %39 = arith.cmpi eq, %arg1, %c0_i32_25 : i32
    %40 = arith.extui %39 : i1 to i32
    %c0_i32_26 = arith.constant 0 : i32
    %41 = arith.cmpi ne, %40, %c0_i32_26 : i32
    scf.if %41 {
      %c8_i32 = arith.constant 8 : i32
      %42 = arith.muli %arg0, %c8_i32 : i32
      %43 = tpu.iota {dimensions = array<i32: 0>} : vector<8x1xi32>
      %44 = vector.broadcast %42 : i32 to vector<8x1xi32>
      %45 = arith.addi %44, %43 : vector<8x1xi32>
      %c8_i32_27 = arith.constant 8 : i32
      %46 = vector.broadcast %c8_i32_27 : i32 to vector<8x1xi32>
      %47 = arith.cmpi slt, %45, %46 : vector<8x1xi32>
      %c0_28 = arith.constant 0 : index
      %c0_29 = arith.constant 0 : index
      %48 = vector.load %arg5[%c0_28, %c0_29] : memref<8x1xf32, #tpu.memory_space<vmem>>, vector<8x1xf32>
      %c0_30 = arith.constant 0 : index
      %c0_31 = arith.constant 0 : index
      %49 = vector.load %arg6[%c0_30, %c0_31] : memref<8x1xf32, #tpu.memory_space<vmem>>, vector<8x1xf32>
      %50 = math.log %49 : vector<8x1xf32>
      %51 = arith.addf %48, %50 : vector<8x1xf32>
      %c0_32 = arith.constant 0 : index
      %c0_33 = arith.constant 0 : index
      %52 = vector.load %arg8[%c0_32, %c0_33] : memref<8x1xf32, #tpu.memory_space<vmem>>, vector<8x1xf32>
      %53 = arith.subf %51, %52 : vector<8x1xf32>
      %cst_34 = arith.constant 0.899999976 : f32
      %54 = vector.broadcast %cst_34 : f32 to vector<8x1xf32>
      %55 = arith.mulf %54, %53 : vector<8x1xf32>
      %cst_35 = arith.constant 1.000000e-01 : f32
      %cst_36 = arith.constant 1.600000e+01 : f32
      %56 = arith.divf %cst_35, %cst_36 : f32
      %cst_37 = arith.constant 1.600000e+01 : f32
      %57 = vector.broadcast %cst_37 : f32 to vector<8x1xf32>
      %58 = arith.mulf %57, %51 : vector<8x1xf32>
      %c0_38 = arith.constant 0 : index
      %c0_39 = arith.constant 0 : index
      %59 = vector.load %arg7[%c0_38, %c0_39] : memref<8x1xf32, #tpu.memory_space<vmem>>, vector<8x1xf32>
      %60 = arith.subf %58, %59 : vector<8x1xf32>
      %61 = vector.broadcast %56 : f32 to vector<8x1xf32>
      %62 = arith.mulf %61, %60 : vector<8x1xf32>
      %63 = arith.addf %55, %62 : vector<8x1xf32>
      %cst_40 = arith.constant 0.000000e+00 : f32
      %64 = vector.broadcast %cst_40 : f32 to vector<8x1xf32>
      %65 = arith.select %47, %63, %64 : vector<8x1xi1>, vector<8x1xf32>
      %66 = vector.shape_cast %65 : vector<8x1xf32> to vector<1x8x1xf32>
      %cst_41 = arith.constant dense<0.000000e+00> : vector<1xf32>
      %67 = vector.multi_reduction <add>, %66, %cst_41 [1, 2] : vector<1x8x1xf32> to vector<1xf32>
      %68 = vector.shape_cast %67 : vector<1xf32> to vector<1x1x1xf32>
      %69 = vector.extract %68[0, 0, 0] : f32 from vector<1x1x1xf32>
      %70 = tpu.iota {dimensions = array<i32: 0>} : vector<8x128xi32>
      %71 = tpu.iota {dimensions = array<i32: 1>} : vector<8x128xi32>
      %c0_i32_42 = arith.constant 0 : i32
      %72 = vector.broadcast %c0_i32_42 : i32 to vector<8x128xi32>
      %73 = arith.cmpi eq, %70, %72 : vector<8x128xi32>
      %c0_i32_43 = arith.constant 0 : i32
      %74 = vector.broadcast %c0_i32_43 : i32 to vector<8x128xi32>
      %75 = arith.cmpi eq, %71, %74 : vector<8x128xi32>
      %76 = arith.andi %73, %75 : vector<8x128xi1>
      %cst_44 = arith.constant 0.000000e+00 : f32
      %77 = vector.broadcast %69 : f32 to vector<8x128xf32>
      %78 = vector.broadcast %cst_44 : f32 to vector<8x128xf32>
      %79 = arith.select %76, %77, %78 : vector<8x128xi1>, vector<8x128xf32>
      %c0_45 = arith.constant 0 : index
      %c0_46 = arith.constant 0 : index
      %80 = vector.load %arg4[%c0_45, %c0_46] : memref<8x128xf32, #tpu.memory_space<vmem>>, vector<8x128xf32>
      tpu.vector_store %arg4[%c0_45, %c0_46], %79 {strides = array<i32>} : memref<8x128xf32, #tpu.memory_space<vmem>>, vector<8x128xf32>,
    } else {
    }
    return
  }
  func.func @transform_0(%arg0: i32, %arg1: i32) -> (i32, i32) {
    %c0_i32 = arith.constant 0 : i32
    return %arg0, %arg1 : i32, i32
  }
  func.func @transform_1(%arg0: i32, %arg1: i32) -> (i32, i32) {
    %c0_i32 = arith.constant 0 : i32
    %c0_i32_0 = arith.constant 0 : i32
    return %arg0, %c0_i32 : i32, i32
  }
  func.func @transform_2(%arg0: i32, %arg1: i32) -> (i32, i32) {
    %c0_i32 = arith.constant 0 : i32
    %c0_i32_0 = arith.constant 0 : i32
    return %arg0, %c0_i32 : i32, i32
  }
}

</mosaic_0001>

<llo_original>
// kernel: tpu_custom_call.1
$region0: #{tpu_custom_call.1}
  #allocation0 [shape = 'u32[]', space=smem, size = 0x4, offset = 0x4, fixed_abs, tag = 'smem constant byte address 0x4 - core index']
  #allocation1 [shape = 'u32[72,128]{1,0:T(1,128)}', space=vmem, size = 0x9000, scoped, tag = 'internal scratch']
  #allocation2 [shape = 'f32[8,1]{1,0:T(8,128)}', space=vmem, size = 0x1000, scoped, tag = 'scratch operand']
  #allocation3 [shape = 'f32[8,1]{1,0:T(8,128)}', space=vmem, size = 0x1000, scoped, tag = 'scratch operand']
  #allocation4 [shape = 'f32[8,1]{1,0:T(8,128)}', space=vmem, size = 0x1000, scoped, tag = 'scratch operand']
  #allocation5 [shape = 'f32[8,1]{1,0:T(8,128)}', space=vmem, size = 0x1000, scoped, tag = 'scratch operand']
  %s0 = inlined_call_operand.vmem [shape: f32[8,16], index: 0, kind: input, shape index: {}]
  %s1 = inlined_call_operand.vmem [shape: s32[8,1], index: 1, kind: input, shape index: {}]
  %s2 = inlined_call_operand.hbm [shape: f32[8,128], index: 2, kind: output, shape index: {}]
  %s3 = sld [smem:[#allocation0]]
  $region26: #{tpu_custom_call.1} parent=0
    _
  %s5 = ssub.s32 1, %s3
  %s6 = scalar_select 0, %s5, %s3
  $region1: #{tpu_custom_call.1} parent=0
    #allocation6 [shape = 'u8[4096]{0}', space=vmem, size = 0x1000, scoped, tag = 'output window, operand 0, single buffered']
    #allocation7 [shape = 's32[1]{0}', space=sflag, size = 0x4, scoped, tag = 'scoped memory for tpu_custom_call.1']
    %7 = vsyncpa [#allocation7], 0
    // Predicated region
    $region2: #{tpu_custom_call.1} parent=1 // pred_check
      _
    $region3: #{tpu_custom_call.1} parent=1 // pred_check_branch
      %9 = sbr.rel (0) target = $region5
    $region4: #{tpu_custom_call.1} parent=1 // pred_region
      _
    $region5: #{tpu_custom_call.1} parent=1 // pred_fallthru
      _
    // Predicated region
    $region6: #{tpu_custom_call.1} parent=1 // pred_check
      _
    $region7: #{tpu_custom_call.1} parent=1 // pred_check_branch
      %11 = sbr.rel (0) target = $region9
    $region8: #{tpu_custom_call.1} parent=1 // pred_region
      _
    $region9: #{tpu_custom_call.1} parent=1 // pred_fallthru
      _
    %p12 = scmp.eq.s32.totalorder 0, 0
    // Predicated region
    $region10: #{tpu_custom_call.1} parent=1 // pred_check
      %p13 = pneg %p12
    $region11: #{tpu_custom_call.1} parent=1 // pred_check_branch
      %15 = sbr.rel (%p13) target = $region13
    $region12: #{tpu_custom_call.1} parent=1 // pred_region
      %vm16 = vcmask 7168
      %17 = vst.msk [vmem:[#allocation2] sm:$0xff] %vm16, -1e+30
      %18 = vst.msk [vmem:[#allocation3] sm:$0xff] %vm16, 0.0
      %19 = vst.msk [vmem:[#allocation4] sm:$0xff] %vm16, 0.0
      %20 = vst.msk [vmem:[#allocation5] sm:$0xff] %vm16, 0.0
    $region13: #{tpu_custom_call.1} parent=1 // pred_fallthru
      _
    %v21 = vld [vmem:[%s0] sm:$0xff]
    %v22 = vlaneseq
    %v23 = vand.u32 %v22, 127
    %v24 = vld [vmem:[%s1] sm:$0xff]
    %s25 = smul.u32 0, 16
    %v26 = vstv %s25
    %v27 = vsub.s32 %v24, %v26
    %v28 = vld [vmem:[#allocation2] sm:$0xff]
    %vm29 = vcmask 130048
    %v30 = vsel %vm29, %v21, -inf
    %31 = vmax.xlane.f32.xlu0 %v30
    %v32 = vpop.xlane.xlu0 %31
    %v33 = vmax.f32 %v28, %v32
    %v34 = vsub.f32 %v28, %v33
    %v35 = vmul.f32 %v34, 1.442695
    %v36 = vpow.pop %v35
    %38 = vset.pattern.permute.xlu0 0
    %39 = vperm.xlu0 %38, %v33
    %v40 = vpop.permute.xlu0 %39
    %v42 = vsub.f32 %v21, %v40
    %v43 = vmul.f32 %v42, 1.442695
    %v44 = vpow.pop %v43
    %v45 = vld [vmem:[#allocation3] sm:$0xff]
    %v46 = vmul.f32 %v36, %v45
    %v47 = vsel %vm29, %v44, 0.0
    %48 = vadd.xlane.f32.xlu0 %v47
    %v49 = vpop.xlane.xlu0 %48
    %v50 = vadd.f32 %v46, %v49
    %vm51 = vcmask 7168
    %52 = vst.msk [vmem:[#allocation3] sm:$0xff] %vm51, %v50
    %53 = vst.msk [vmem:[#allocation2] sm:$0xff] %vm51, %v33
    %v54 = vld [vmem:[#allocation4] sm:$0xff]
    %v55 = vsel %vm29, %v21, 0.0
    %56 = vadd.xlane.f32.xlu0 %v55
    %v57 = vpop.xlane.xlu0 %56
    %v58 = vadd.f32 %v54, %v57
    %59 = vst.msk [vmem:[#allocation4] sm:$0xff] %vm51, %v58
    %v60 = vld [vmem:[#allocation5] sm:$0xff]
    %61 = vset.pattern.permute.xlu0 0
    %62 = vperm.xlu0 %61, %v27
    %v63 = vpop.permute.xlu0 %62
    %vm64 = vcmp.eq.s32.totalorder %v23, %v63
    %v65 = vsel %vm64, %v21, 0.0
    %v66 = vsel %vm29, %v65, 0.0
    %67 = vadd.xlane.f32.xlu0 %v66
    %v68 = vpop.xlane.xlu0 %67
    %v69 = vadd.f32 %v60, %v68
    %70 = vst.msk [vmem:[#allocation5] sm:$0xff] %vm51, %v69
    // Predicated region
    $region14: #{tpu_custom_call.1} parent=1 // pred_check
      %p71 = pneg %p12
    $region15: #{tpu_custom_call.1} parent=1 // pred_check_branch
      %73 = sbr.rel (%p71) target = $region17
    $region16: #{tpu_custom_call.1} parent=1 // pred_region
      %s74 = smul.u32 0, 8
      %v75 = vlaneseq
      %v76 = vshrl.u32 %v75, 7
      %v77 = vstv %s74
      %v78 = vadd.s32 %v77, %v76
      %vm79 = vcmp.lt.s32.totalorder %v78, 8
      %v80 = vld [vmem:[#allocation2] sm:$0xff]
      %v81 = vld [vmem:[#allocation3] sm:$0xff]
      %v82 = vlog2.pop %v81
      %v83 = vmul.f32 %v82, 0.6931472
      %v84 = vadd.f32 %v80, %v83
      %v85 = vld [vmem:[#allocation5] sm:$0xff]
      %v86 = vsub.f32 %v84, %v85
      %v87 = vmul.f32 %v86, 0.9
      %v88 = vmul.f32 %v84, 16.0
      %v89 = vld [vmem:[#allocation4] sm:$0xff]
      %v90 = vsub.f32 %v88, %v89
      %v91 = vmul.f32 %v90, 0.00625
      %v92 = vadd.f32 %v87, %v91
      %v93 = vsel %vm79, %v92, 0.0
      %v94 = vsel %vm51, %v93, 0.0
      %95 = vadd.xlane.f32.xlu0 %v94
      %v96 = vpop.xlane.xlu0 %95
      %v97 = vrot.slane %v96, 4
      %v98 = vadd.f32 %v96, %v97
      %v99 = vrot.slane %v98, 2
      %v100 = vadd.f32 %v98, %v99
      %v101 = vrot.slane %v100, 1
      %v102 = vadd.f32 %v100, %v101
      %s103 = vtos %v102
      %vm104 = vcmp.eq.s32.totalorder %v76, 0
      %vm105 = vcmp.eq.s32.totalorder %v23, 0
      %vm106 = vmand %vm104, %vm105
      %v107 = vstv %s103
      %v108 = vsel %vm106, %v107, 0.0
      %109 = vst [vmem:[#allocation6] sm:$0xff] %v108
    $region17: #{tpu_custom_call.1} parent=1 // pred_fallthru
      _
    // Predicated region
    $region18: #{tpu_custom_call.1} parent=1 // pred_check
      _
    $region19: #{tpu_custom_call.1} parent=1 // pred_check_branch
      %111 = sbr.rel (0) target = $region21
    $region20: #{tpu_custom_call.1} parent=1 // pred_region
      %113 = vsyncadd [#allocation7], 0
      %s115 = sshll.u32 [#allocation6], 4
      %s116 = int_to_ptr.vmem [resolvable:$true] %s115
      %s117 = sshll.u32 %s2, 4
      %s118 = int_to_ptr.hbm [resolvable:$true] %s117
      %120 = dma.vmem_to_hbm [thread:$0]  %s116, 128, %s118, [#allocation7]
    $region21: #{tpu_custom_call.1} parent=1 // pred_fallthru
      _
    // Predicated region
    $region22: #{tpu_custom_call.1} parent=1 // pred_check
      _
    $region23: #{tpu_custom_call.1} parent=1 // pred_check_branch
      %122 = sbr.rel (0) target = $region25
    $region24: #{tpu_custom_call.1} parent=1 // pred_region
      %124 = dma.done [#allocation7], 128
    $region25: #{tpu_custom_call.1} parent=1 // pred_fallthru
      _
    %125 = vsyncpa [#allocation7], 1

</llo_original>
